<compile_context>
chip_gen: v5e
topology: v5e:2x2
jax: 0.10.0
libtpu: 0.0.40
codegen_flags: <defaults>
</compile_context>

<pallas_src>
import functools

import jax
import jax.numpy as jnp
import numpy as np
from jax import lax
from jax.experimental import pallas as pl
from jax.experimental.pallas import tpu as pltpu

_TV = 512  # vocab chunk (lanes) per grid step; multiple of 128


def _round_up(x, m):
    return (x + m - 1) // m * m


def _baseline_kernel(ids_ref,   # VMEM (TB, L)   int32 token ids (batch-major)
                     tw_ref,    # VMEM (1, TV)   f32 chunk of  E @ W^T  (zero padded)
                     b_ref,     # SMEM (1, 1)    f32 fc bias
                     out_ref,   # VMEM (TB, 128) f32 lane-dense output slab
                     acc_ref,   # VMEM (TB, 1)   f32 logit accumulator (scratch)
                     *, seq_len, inv_len):
    v = pl.program_id(1)

    @pl.when(v == 0)
    def _():
        acc_ref[...] = jnp.zeros_like(acc_ref)

    tb = ids_ref.shape[0]
    tv = tw_ref.shape[1]

    ids = ids_ref[...]                                              # tiny (TB, L) tile
    vocab_iota = lax.broadcasted_iota(jnp.int32, (tb, tv), 1) + v * tv

    # counts[b, j] = #{ l : ids[b, l] == v*tv + j } -- full-tile VPU compares.
    # L is small and static here; for long sequences use a lax.fori_loop.
    counts = jnp.zeros((tb, tv), jnp.float32)
    for l in range(seq_len):
        tok = ids[:, l:l + 1]                                       # (TB, 1)
        counts = counts + (vocab_iota == tok).astype(jnp.float32)

    # Partial logits for this vocab chunk: VPU multiply + lane reduction.
    acc_ref[...] += jnp.sum(counts * tw_ref[...], axis=1, keepdims=True)

    @pl.when(v == pl.num_programs(1) - 1)
    def _():
        logits = acc_ref[...] * inv_len + b_ref[0, 0]               # (TB, 1)
        out_ref[...] = jnp.broadcast_to(logits, out_ref.shape)      # lane-dense write


def precompute_head(emb_table, fc_w, fc_b):
    """One-time (cacheable) parameter prep: collapse Embedding and Linear.

    Returns (tw_row, bias2) where tw_row is (1, V_pad) f32 = padded (E @ W^T)^T
    and bias2 is the (1, 1) f32 bias."""
    V, D = emb_table.shape
    tw = emb_table.astype(jnp.float32) @ fc_w.astype(jnp.float32).reshape(D, 1)  # (V, 1)
    V_pad = _round_up(V, _TV)
    tw_row = jnp.pad(tw.reshape(1, V), ((0, 0), (0, V_pad - V)))                 # (1, V_pad)
    bias2 = fc_b.astype(jnp.float32).reshape(1, 1)
    return tw_row, bias2


def baseline_forward(x_tokens, tw_row, fc_b2, lengths=None):
    """x_tokens: (L, B) int token ids; tw_row/fc_b2 from precompute_head.

    Returns (B,) float32, matching Baseline.forward (`lengths` is ignored,
    exactly as in the reference PyTorch module)."""
    del lengths
    L, B = x_tokens.shape
    V_pad = tw_row.shape[1]

    # Batch tiling: one sublane-dense tile if small, else 128-row tiles.
    B8 = _round_up(B, 8)
    if B8 <= 128:
        TB, B_pad = B8, B8
    else:
        TB, B_pad = 128, _round_up(B, 128)

    # Batch-major ids. No clamp needed: there are no indexed reads in the
    # kernel, out-of-range ids simply never match any vocab lane.
    ids = x_tokens.astype(jnp.int32).T                              # (B, L)
    ids = jnp.pad(ids, ((0, B_pad - B), (0, 0)))                    # (B_pad, L)

    kernel = functools.partial(_baseline_kernel, seq_len=L, inv_len=1.0 / L)

    out = pl.pallas_call(
        kernel,
        out_shape=jax.ShapeDtypeStruct((B_pad, 128), jnp.float32),
        grid=(B_pad // TB, V_pad // _TV),
        in_specs=[
            pl.BlockSpec((TB, L), lambda b, v: (b, 0)),             # ids (per batch tile)
            pl.BlockSpec((1, _TV), lambda b, v: (0, v)),            # tw chunk (streamed over V)
            pl.BlockSpec(memory_space=pltpu.MemorySpace.SMEM),      # fc bias scalar
        ],
        out_specs=pl.BlockSpec((TB, 128), lambda b, v: (b, 0)),
        scratch_shapes=[pltpu.VMEM((TB, 1), jnp.float32)],
        compiler_params=pltpu.CompilerParams(
            dimension_semantics=("parallel", "arbitrary"),
            vmem_limit_bytes=32 * 1024 * 1024,
        ),
    )(ids, tw_row, fc_b2)

    return out[:B, 0]                                               # (B,) == .squeeze(1)


def _reference(x_tokens, emb_table, fc_w, fc_b):
    """Pure-numpy reference (host precision), mirrors the PyTorch forward."""
    x = np.asarray(x_tokens)
    E = np.asarray(emb_table, dtype=np.float32)
    W = np.asarray(fc_w, dtype=np.float32)
    b = np.asarray(fc_b, dtype=np.float32)
    embedded = E[x]                      # (L, B, D)
    average = embedded.mean(axis=0)      # (B, D)
    return average @ W[0] + b[0]         # (B,)


if __name__ == "__main__":
    # Small deterministic setup: vocab=64, embedding_dim=32, seq_len=8, batch=4.
    V, D, L, B = 64, 32, 8, 4
    key = jax.random.PRNGKey(0)
    k_emb, k_x, k_w, k_b = jax.random.split(key, 4)

    emb_table = jax.random.normal(k_emb, (V, D), dtype=jnp.float32)      # vocab.vectors
    x_tokens = jax.random.randint(k_x, (L, B), 0, V, dtype=jnp.int32)    # (seq_len, batch)
    fc_w = 0.1 * jax.random.normal(k_w, (1, D), dtype=jnp.float32)       # nn.Linear(D, 1).weight
    fc_b = 0.1 * jax.random.normal(k_b, (1,), dtype=jnp.float32)         # nn.Linear(D, 1).bias

    # One-time parameter prep (would be cached at model init in practice).
    tw_row, fc_b2 = precompute_head(emb_table, fc_w, fc_b)

    out = baseline_forward(x_tokens, tw_row, fc_b2)
    out = jax.block_until_ready(out)

    ref = _reference(x_tokens, emb_table, fc_w, fc_b)
    np.testing.assert_allclose(np.asarray(out), ref, rtol=1e-4, atol=1e-4)

    print("KERNEL_OK")
</pallas_src>

<mosaic_0001>
module attributes {stable_mosaic.version = 11 : i64} {
  func.func @_baseline_kernel(%arg0: i32, %arg1: i32, %arg2: memref<8x8xi32, #tpu.memory_space<vmem>>, %arg3: memref<1x512xf32, #tpu.memory_space<vmem>>, %arg4: memref<1x1xf32, #tpu.memory_space<smem>>, %arg5: memref<8x128xf32, #tpu.memory_space<vmem>>, %arg6: memref<8x1xf32, #tpu.memory_space<vmem>>) attributes {dimension_semantics = [#tpu.dimension_semantics<parallel>, #tpu.dimension_semantics<arbitrary>], iteration_bounds = array<i64: 1, 1>, scalar_prefetch = 0 : i64, scratch_operands = 1 : i64, tpu.core_type = #tpu.core_type<tc>, window_params = [{transform_indices = @transform_0, window_bounds = array<i64: 8, 8>}, {transform_indices = @transform_1, window_bounds = array<i64: 1, 512>}, {transform_indices = @transform_2, window_bounds = array<i64: 1, 1>}, {transform_indices = @transform_3, window_bounds = array<i64: 8, 128>}]} {
    %c0_i32 = arith.constant 0 : i32
    %0 = arith.cmpi eq, %arg1, %c0_i32 : i32
    %1 = arith.extui %0 : i1 to i32
    %c0_i32_0 = arith.constant 0 : i32
    %2 = arith.cmpi ne, %1, %c0_i32_0 : i32
    scf.if %2 {
      %cst_11 = arith.constant 0.000000e+00 : f32
      %68 = vector.broadcast %cst_11 : f32 to vector<8x1xf32>
      %c0_12 = arith.constant 0 : index
      %c0_13 = arith.constant 0 : index
      %69 = vector.load %arg6[%c0_12, %c0_13] : memref<8x1xf32, #tpu.memory_space<vmem>>, vector<8x1xf32>
      tpu.vector_store %arg6[%c0_12, %c0_13], %68 {strides = array<i32>} : memref<8x1xf32, #tpu.memory_space<vmem>>, vector<8x1xf32>,
    } else {
    }
    %c0 = arith.constant 0 : index
    %c0_1 = arith.constant 0 : index
    %3 = vector.load %arg2[%c0, %c0_1] : memref<8x8xi32, #tpu.memory_space<vmem>>, vector<8x8xi32>
    %4 = tpu.iota {dimensions = array<i32: 1>} : vector<8x512xi32>
    %c512_i32 = arith.constant 512 : i32
    %5 = arith.muli %arg1, %c512_i32 : i32
    %6 = vector.broadcast %5 : i32 to vector<8x512xi32>
    %7 = arith.addi %4, %6 : vector<8x512xi32>
    %cst = arith.constant 0.000000e+00 : f32
    %8 = vector.broadcast %cst : f32 to vector<8x512xf32>
    %9 = vector.extract_strided_slice %3 {offsets = [0, 0], sizes = [8, 1], strides = [1, 1]} : vector<8x8xi32> to vector<8x1xi32>
    %10 = vector.broadcast %9 : vector<8x1xi32> to vector<8x512xi32>
    %11 = arith.cmpi eq, %7, %10 : vector<8x512xi32>
    %12 = arith.extui %11 : vector<8x512xi1> to vector<8x512xi32>
    %13 = arith.sitofp %12 : vector<8x512xi32> to vector<8x512xf32>
    %14 = arith.addf %8, %13 : vector<8x512xf32>
    %15 = vector.extract_strided_slice %3 {offsets = [0, 1], sizes = [8, 1], strides = [1, 1]} : vector<8x8xi32> to vector<8x1xi32>
    %16 = vector.broadcast %15 : vector<8x1xi32> to vector<8x512xi32>
    %17 = arith.cmpi eq, %7, %16 : vector<8x512xi32>
    %18 = arith.extui %17 : vector<8x512xi1> to vector<8x512xi32>
    %19 = arith.sitofp %18 : vector<8x512xi32> to vector<8x512xf32>
    %20 = arith.addf %14, %19 : vector<8x512xf32>
    %21 = vector.extract_strided_slice %3 {offsets = [0, 2], sizes = [8, 1], strides = [1, 1]} : vector<8x8xi32> to vector<8x1xi32>
    %22 = vector.broadcast %21 : vector<8x1xi32> to vector<8x512xi32>
    %23 = arith.cmpi eq, %7, %22 : vector<8x512xi32>
    %24 = arith.extui %23 : vector<8x512xi1> to vector<8x512xi32>
    %25 = arith.sitofp %24 : vector<8x512xi32> to vector<8x512xf32>
    %26 = arith.addf %20, %25 : vector<8x512xf32>
    %27 = vector.extract_strided_slice %3 {offsets = [0, 3], sizes = [8, 1], strides = [1, 1]} : vector<8x8xi32> to vector<8x1xi32>
    %28 = vector.broadcast %27 : vector<8x1xi32> to vector<8x512xi32>
    %29 = arith.cmpi eq, %7, %28 : vector<8x512xi32>
    %30 = arith.extui %29 : vector<8x512xi1> to vector<8x512xi32>
    %31 = arith.sitofp %30 : vector<8x512xi32> to vector<8x512xf32>
    %32 = arith.addf %26, %31 : vector<8x512xf32>
    %33 = vector.extract_strided_slice %3 {offsets = [0, 4], sizes = [8, 1], strides = [1, 1]} : vector<8x8xi32> to vector<8x1xi32>
    %34 = vector.broadcast %33 : vector<8x1xi32> to vector<8x512xi32>
    %35 = arith.cmpi eq, %7, %34 : vector<8x512xi32>
    %36 = arith.extui %35 : vector<8x512xi1> to vector<8x512xi32>
    %37 = arith.sitofp %36 : vector<8x512xi32> to vector<8x512xf32>
    %38 = arith.addf %32, %37 : vector<8x512xf32>
    %39 = vector.extract_strided_slice %3 {offsets = [0, 5], sizes = [8, 1], strides = [1, 1]} : vector<8x8xi32> to vector<8x1xi32>
    %40 = vector.broadcast %39 : vector<8x1xi32> to vector<8x512xi32>
    %41 = arith.cmpi eq, %7, %40 : vector<8x512xi32>
    %42 = arith.extui %41 : vector<8x512xi1> to vector<8x512xi32>
    %43 = arith.sitofp %42 : vector<8x512xi32> to vector<8x512xf32>
    %44 = arith.addf %38, %43 : vector<8x512xf32>
    %45 = vector.extract_strided_slice %3 {offsets = [0, 6], sizes = [8, 1], strides = [1, 1]} : vector<8x8xi32> to vector<8x1xi32>
    %46 = vector.broadcast %45 : vector<8x1xi32> to vector<8x512xi32>
    %47 = arith.cmpi eq, %7, %46 : vector<8x512xi32>
    %48 = arith.extui %47 : vector<8x512xi1> to vector<8x512xi32>
    %49 = arith.sitofp %48 : vector<8x512xi32> to vector<8x512xf32>
    %50 = arith.addf %44, %49 : vector<8x512xf32>
    %51 = vector.extract_strided_slice %3 {offsets = [0, 7], sizes = [8, 1], strides = [1, 1]} : vector<8x8xi32> to vector<8x1xi32>
    %52 = vector.broadcast %51 : vector<8x1xi32> to vector<8x512xi32>
    %53 = arith.cmpi eq, %7, %52 : vector<8x512xi32>
    %54 = arith.extui %53 : vector<8x512xi1> to vector<8x512xi32>
    %55 = arith.sitofp %54 : vector<8x512xi32> to vector<8x512xf32>
    %56 = arith.addf %50, %55 : vector<8x512xf32>
    %c0_2 = arith.constant 0 : index
    %c0_3 = arith.constant 0 : index
    %57 = vector.load %arg6[%c0_2, %c0_3] : memref<8x1xf32, #tpu.memory_space<vmem>>, vector<8x1xf32>
    %c0_4 = arith.constant 0 : index
    %c0_5 = arith.constant 0 : index
    %58 = vector.load %arg3[%c0_4, %c0_5] : memref<1x512xf32, #tpu.memory_space<vmem>>, vector<1x512xf32>
    %59 = vector.broadcast %58 : vector<1x512xf32> to vector<8x512xf32>
    %60 = arith.mulf %56, %59 : vector<8x512xf32>
    %cst_6 = arith.constant dense<0.000000e+00> : vector<8xf32>
    %61 = vector.multi_reduction <add>, %60, %cst_6 [1] : vector<8x512xf32> to vector<8xf32>
    %62 = vector.shape_cast %61 : vector<8xf32> to vector<8x1xf32>
    %63 = arith.addf %57, %62 : vector<8x1xf32>
    %c0_7 = arith.constant 0 : index
    %c0_8 = arith.constant 0 : index
    %64 = vector.load %arg6[%c0_7, %c0_8] : memref<8x1xf32, #tpu.memory_space<vmem>>, vector<8x1xf32>
    tpu.vector_store %arg6[%c0_7, %c0_8], %63 {strides = array<i32>} : memref<8x1xf32, #tpu.memory_space<vmem>>, vector<8x1xf32>,
    %c0_i32_9 = arith.constant 0 : i32
    %65 = arith.cmpi eq, %arg1, %c0_i32_9 : i32
    %66 = arith.extui %65 : i1 to i32
    %c0_i32_10 = arith.constant 0 : i32
    %67 = arith.cmpi ne, %66, %c0_i32_10 : i32
    scf.if %67 {
      %c0_11 = arith.constant 0 : index
      %c0_12 = arith.constant 0 : index
      %68 = vector.load %arg6[%c0_11, %c0_12] : memref<8x1xf32, #tpu.memory_space<vmem>>, vector<8x1xf32>
      %cst_13 = arith.constant 1.250000e-01 : f32
      %69 = vector.broadcast %cst_13 : f32 to vector<8x1xf32>
      %70 = arith.mulf %68, %69 : vector<8x1xf32>
      %c0_14 = arith.constant 0 : index
      %c0_15 = arith.constant 0 : index
      %71 = memref.load %arg4[%c0_14, %c0_15] : memref<1x1xf32, #tpu.memory_space<smem>>
      %72 = vector.broadcast %71 : f32 to vector<8x1xf32>
      %73 = arith.addf %70, %72 : vector<8x1xf32>
      %74 = vector.shape_cast %73 : vector<8x1xf32> to vector<8x1xf32>
      %75 = vector.broadcast %74 : vector<8x1xf32> to vector<8x128xf32>
      %c0_16 = arith.constant 0 : index
      %c0_17 = arith.constant 0 : index
      %76 = vector.load %arg5[%c0_16, %c0_17] : memref<8x128xf32, #tpu.memory_space<vmem>>, vector<8x128xf32>
      tpu.vector_store %arg5[%c0_16, %c0_17], %75 {strides = array<i32>} : memref<8x128xf32, #tpu.memory_space<vmem>>, vector<8x128xf32>,
    } else {
    }
    return
  }
  func.func @transform_0(%arg0: i32, %arg1: i32) -> (i32, i32) {
    %c0_i32 = arith.constant 0 : i32
    %c0_i32_0 = arith.constant 0 : i32
    return %arg0, %c0_i32 : i32, i32
  }
  func.func @transform_1(%arg0: i32, %arg1: i32) -> (i32, i32) {
    %c0_i32 = arith.constant 0 : i32
    %c0_i32_0 = arith.constant 0 : i32
    return %c0_i32, %arg1 : i32, i32
  }
  func.func @transform_2(%arg0: i32, %arg1: i32) -> (i32, i32) {
    %c0_i32 = arith.constant 0 : i32
    %c0_i32_0 = arith.constant 0 : i32
    %c0_i32_1 = arith.constant 0 : i32
    return %c0_i32, %c0_i32_0 : i32, i32
  }
  func.func @transform_3(%arg0: i32, %arg1: i32) -> (i32, i32) {
    %c0_i32 = arith.constant 0 : i32
    %c0_i32_0 = arith.constant 0 : i32
    return %arg0, %c0_i32 : i32, i32
  }
}

</mosaic_0001>

<llo_original>
// kernel: tpu_custom_call.1
$region0: #{tpu_custom_call.1}
  #allocation0 [shape = 'u32[]', space=smem, size = 0x4, offset = 0x4, fixed_abs, tag = 'smem constant byte address 0x4 - core index']
  #allocation1 [shape = 'u32[72,128]{1,0:T(1,128)}', space=vmem, size = 0x9000, scoped, tag = 'internal scratch']
  #allocation2 [shape = 'f32[8,1]{1,0:T(8,128)}', space=vmem, size = 0x1000, scoped, tag = 'scratch operand']
  #allocation3 [shape = 'f32[1,1]{1,0:T(1,128)S(6)}', space=smem, size = 0x200, scoped, tag = 'scoped memory for tpu_custom_call.1']
  %s0 = inlined_call_operand.hbm [shape: s32[8,8], index: 0, kind: input, shape index: {}]
  %s1 = inlined_call_operand.hbm [shape: f32[1,512], index: 1, kind: input, shape index: {}]
  %s2 = inlined_call_operand.<no memory space> [shape: f32[1,1], index: 2, kind: input, shape index: {}]
  %s3 = inlined_call_operand.hbm [shape: f32[8,128], index: 3, kind: output, shape index: {}]
  %s4 = sld [smem:[#allocation0]]
  $region38: #{tpu_custom_call.1} parent=0
    _
  %s6 = ssub.s32 1, %s4
  %s7 = scalar_select 0, %s6, %s4
  %8 = sst [smem:[#allocation3]] %s2
  $region1: #{tpu_custom_call.1} parent=0
    #allocation4 [shape = 'u8[4096]{0}', space=vmem, size = 0x1000, scoped, tag = 'input window, operand 0, single buffered']
    #allocation5 [shape = 's32[1]{0}', space=sflag, size = 0x4, scoped, tag = 'scoped memory for tpu_custom_call.1']
    #allocation6 [shape = 's32[1]{0}', space=sflag, size = 0x4, scoped, tag = 'scoped memory for tpu_custom_call.1']
    #allocation7 [shape = 'u8[2048]{0}', space=vmem, size = 0x800, scoped, tag = 'input window, operand 1, single buffered']
    #allocation8 [shape = 's32[1]{0}', space=sflag, size = 0x4, scoped, tag = 'scoped memory for tpu_custom_call.1']
    #allocation9 [shape = 'u8[4096]{0}', space=vmem, size = 0x1000, scoped, tag = 'output window, operand 0, single buffered']
    %9 = vsyncpa [#allocation5], 0
    %10 = vsyncpa [#allocation8], 0
    %11 = vsyncpa [#allocation6], 0
    // Predicated region
    $region2: #{tpu_custom_call.1} parent=1 // pred_check
      _
    $region3: #{tpu_custom_call.1} parent=1 // pred_check_branch
      %13 = sbr.rel (0) target = $region5
    $region4: #{tpu_custom_call.1} parent=1 // pred_region
      %15 = vsyncadd [#allocation5], 0
      %s17 = sshll.u32 %s0, 4
      %s18 = int_to_ptr.hbm [resolvable:$true] %s17
      %s19 = sshll.u32 [#allocation4], 4
      %s20 = int_to_ptr.vmem [resolvable:$true] %s19
      %22 = dma.hbm_to_vmem [thread:$0]  %s18, 128, %s20, [#allocation5]
    $region5: #{tpu_custom_call.1} parent=1 // pred_fallthru
      _
    // Predicated region
    $region6: #{tpu_custom_call.1} parent=1 // pred_check
      _
    $region7: #{tpu_custom_call.1} parent=1 // pred_check_branch
      %24 = sbr.rel (0) target = $region9
    $region8: #{tpu_custom_call.1} parent=1 // pred_region
      %26 = vsyncadd [#allocation8], 0
      %s28 = sshll.u32 %s1, 4
      %s29 = int_to_ptr.hbm [resolvable:$true] %s28
      %s30 = sshll.u32 [#allocation7], 4
      %s31 = int_to_ptr.vmem [resolvable:$true] %s30
      %33 = dma.hbm_to_vmem [thread:$0]  %s29, 64, %s31, [#allocation8]
    $region9: #{tpu_custom_call.1} parent=1 // pred_fallthru
      _
    // Predicated region
    $region10: #{tpu_custom_call.1} parent=1 // pred_check
      _
    $region11: #{tpu_custom_call.1} parent=1 // pred_check_branch
      %35 = sbr.rel (0) target = $region13
    $region12: #{tpu_custom_call.1} parent=1 // pred_region
      _
    $region13: #{tpu_custom_call.1} parent=1 // pred_fallthru
      _
    // Predicated region
    $region14: #{tpu_custom_call.1} parent=1 // pred_check
      _
    $region15: #{tpu_custom_call.1} parent=1 // pred_check_branch
      %37 = sbr.rel (0) target = $region17
    $region16: #{tpu_custom_call.1} parent=1 // pred_region
      %39 = dma.done [#allocation5], 128
    $region17: #{tpu_custom_call.1} parent=1 // pred_fallthru
      _
    // Predicated region
    $region18: #{tpu_custom_call.1} parent=1 // pred_check
      _
    $region19: #{tpu_custom_call.1} parent=1 // pred_check_branch
      %41 = sbr.rel (0) target = $region21
    $region20: #{tpu_custom_call.1} parent=1 // pred_region
      %43 = dma.done [#allocation8], 64
    $region21: #{tpu_custom_call.1} parent=1 // pred_fallthru
      _
    %p44 = scmp.eq.s32.totalorder 0, 0
    // Predicated region
    $region22: #{tpu_custom_call.1} parent=1 // pred_check
      %p45 = pneg %p44
    $region23: #{tpu_custom_call.1} parent=1 // pred_check_branch
      %47 = sbr.rel (%p45) target = $region25
    $region24: #{tpu_custom_call.1} parent=1 // pred_region
      %vm48 = vcmask 7168
      %49 = vst.msk [vmem:[#allocation2] sm:$0xff] %vm48, 0.0
    $region25: #{tpu_custom_call.1} parent=1 // pred_fallthru
      _
    %v50 = vld [vmem:[#allocation4] sm:$0xff]
    %v51 = vlaneseq
    %v52 = vand.u32 %v51, 127
    %v53 = vadd.s32 %v52, 128
    %v54 = vadd.s32 %v52, 256
    %v55 = vadd.s32 %v52, 384
    %s56 = smul.u32 0, 512
    %v57 = vstv %s56
    %v58 = vadd.s32 %v52, %v57
    %v59 = vadd.s32 %v53, %v57
    %v60 = vadd.s32 %v54, %v57
    %v61 = vadd.s32 %v55, %v57
    %62 = vset.pattern.permute.xlu0 0
    %63 = vperm.xlu0 %62, %v50
    %v64 = vpop.permute.xlu0 %63
    %vm65 = vcmp.eq.s32.totalorder %v58, %v64
    %vm66 = vcmp.eq.s32.totalorder %v59, %v64
    %vm67 = vcmp.eq.s32.totalorder %v60, %v64
    %vm68 = vcmp.eq.s32.totalorder %v61, %v64
    %v69 = vsel %vm65, 1, 0
    %v70 = vsel %vm66, 1, 0
    %v71 = vsel %vm67, 1, 0
    %v72 = vsel %vm68, 1, 0
    %v73 = vcvt.s32.f32 %v69
    %v74 = vcvt.s32.f32 %v70
    %v75 = vcvt.s32.f32 %v71
    %v76 = vcvt.s32.f32 %v72
    %v77 = vadd.f32 %v73, 0.0
    %v78 = vadd.f32 %v74, 0.0
    %v79 = vadd.f32 %v75, 0.0
    %v80 = vadd.f32 %v76, 0.0
    %81 = vset.pattern.permute.xlu0 1
    %82 = vperm.xlu0 %81, %v50
    %v83 = vpop.permute.xlu0 %82
    %vm84 = vcmp.eq.s32.totalorder %v58, %v83
    %vm85 = vcmp.eq.s32.totalorder %v59, %v83
    %vm86 = vcmp.eq.s32.totalorder %v60, %v83
    %vm87 = vcmp.eq.s32.totalorder %v61, %v83
    %v88 = vsel %vm84, 1, 0
    %v89 = vsel %vm85, 1, 0
    %v90 = vsel %vm86, 1, 0
    %v91 = vsel %vm87, 1, 0
    %v92 = vcvt.s32.f32 %v88
    %v93 = vcvt.s32.f32 %v89
    %v94 = vcvt.s32.f32 %v90
    %v95 = vcvt.s32.f32 %v91
    %v96 = vadd.f32 %v77, %v92
    %v97 = vadd.f32 %v78, %v93
    %v98 = vadd.f32 %v79, %v94
    %v99 = vadd.f32 %v80, %v95
    %100 = vset.pattern.permute.xlu0 2
    %101 = vperm.xlu0 %100, %v50
    %v102 = vpop.permute.xlu0 %101
    %vm103 = vcmp.eq.s32.totalorder %v58, %v102
    %vm104 = vcmp.eq.s32.totalorder %v59, %v102
    %vm105 = vcmp.eq.s32.totalorder %v60, %v102
    %vm106 = vcmp.eq.s32.totalorder %v61, %v102
    %v107 = vsel %vm103, 1, 0
    %v108 = vsel %vm104, 1, 0
    %v109 = vsel %vm105, 1, 0
    %v110 = vsel %vm106, 1, 0
    %v111 = vcvt.s32.f32 %v107
    %v112 = vcvt.s32.f32 %v108
    %v113 = vcvt.s32.f32 %v109
    %v114 = vcvt.s32.f32 %v110
    %v115 = vadd.f32 %v96, %v111
    %v116 = vadd.f32 %v97, %v112
    %v117 = vadd.f32 %v98, %v113
    %v118 = vadd.f32 %v99, %v114
    %119 = vset.pattern.permute.xlu0 3
    %120 = vperm.xlu0 %119, %v50
    %v121 = vpop.permute.xlu0 %120
    %vm122 = vcmp.eq.s32.totalorder %v58, %v121
    %vm123 = vcmp.eq.s32.totalorder %v59, %v121
    %vm124 = vcmp.eq.s32.totalorder %v60, %v121
    %vm125 = vcmp.eq.s32.totalorder %v61, %v121
    %v126 = vsel %vm122, 1, 0
    %v127 = vsel %vm123, 1, 0
    %v128 = vsel %vm124, 1, 0
    %v129 = vsel %vm125, 1, 0
    %v130 = vcvt.s32.f32 %v126
    %v131 = vcvt.s32.f32 %v127
    %v132 = vcvt.s32.f32 %v128
    %v133 = vcvt.s32.f32 %v129
    %v134 = vadd.f32 %v115, %v130
    %v135 = vadd.f32 %v116, %v131
    %v136 = vadd.f32 %v117, %v132
    %v137 = vadd.f32 %v118, %v133
    %138 = vset.pattern.permute.xlu0 4
    %139 = vperm.xlu0 %138, %v50
    %v140 = vpop.permute.xlu0 %139
    %vm141 = vcmp.eq.s32.totalorder %v58, %v140
    %vm142 = vcmp.eq.s32.totalorder %v59, %v140
    %vm143 = vcmp.eq.s32.totalorder %v60, %v140
    %vm144 = vcmp.eq.s32.totalorder %v61, %v140
    %v145 = vsel %vm141, 1, 0
    %v146 = vsel %vm142, 1, 0
    %v147 = vsel %vm143, 1, 0
    %v148 = vsel %vm144, 1, 0
    %v149 = vcvt.s32.f32 %v145
    %v150 = vcvt.s32.f32 %v146
    %v151 = vcvt.s32.f32 %v147
    %v152 = vcvt.s32.f32 %v148
    %v153 = vadd.f32 %v134, %v149
    %v154 = vadd.f32 %v135, %v150
    %v155 = vadd.f32 %v136, %v151
    %v156 = vadd.f32 %v137, %v152
    %157 = vset.pattern.permute.xlu0 5
    %158 = vperm.xlu0 %157, %v50
    %v159 = vpop.permute.xlu0 %158
    %vm160 = vcmp.eq.s32.totalorder %v58, %v159
    %vm161 = vcmp.eq.s32.totalorder %v59, %v159
    %vm162 = vcmp.eq.s32.totalorder %v60, %v159
    %vm163 = vcmp.eq.s32.totalorder %v61, %v159
    %v164 = vsel %vm160, 1, 0
    %v165 = vsel %vm161, 1, 0
    %v166 = vsel %vm162, 1, 0
    %v167 = vsel %vm163, 1, 0
    %v168 = vcvt.s32.f32 %v164
    %v169 = vcvt.s32.f32 %v165
    %v170 = vcvt.s32.f32 %v166
    %v171 = vcvt.s32.f32 %v167
    %v172 = vadd.f32 %v153, %v168
    %v173 = vadd.f32 %v154, %v169
    %v174 = vadd.f32 %v155, %v170
    %v175 = vadd.f32 %v156, %v171
    %176 = vset.pattern.permute.xlu0 6
    %177 = vperm.xlu0 %176, %v50
    %v178 = vpop.permute.xlu0 %177
    %vm179 = vcmp.eq.s32.totalorder %v58, %v178
    %vm180 = vcmp.eq.s32.totalorder %v59, %v178
    %vm181 = vcmp.eq.s32.totalorder %v60, %v178
    %vm182 = vcmp.eq.s32.totalorder %v61, %v178
    %v183 = vsel %vm179, 1, 0
    %v184 = vsel %vm180, 1, 0
    %v185 = vsel %vm181, 1, 0
    %v186 = vsel %vm182, 1, 0
    %v187 = vcvt.s32.f32 %v183
    %v188 = vcvt.s32.f32 %v184
    %v189 = vcvt.s32.f32 %v185
    %v190 = vcvt.s32.f32 %v186
    %v191 = vadd.f32 %v172, %v187
    %v192 = vadd.f32 %v173, %v188
    %v193 = vadd.f32 %v174, %v189
    %v194 = vadd.f32 %v175, %v190
    %195 = vset.pattern.permute.xlu0 7
    %196 = vperm.xlu0 %195, %v50
    %v197 = vpop.permute.xlu0 %196
    %vm198 = vcmp.eq.s32.totalorder %v58, %v197
    %vm199 = vcmp.eq.s32.totalorder %v59, %v197
    %vm200 = vcmp.eq.s32.totalorder %v60, %v197
    %vm201 = vcmp.eq.s32.totalorder %v61, %v197
    %v202 = vsel %vm198, 1, 0
    %v203 = vsel %vm199, 1, 0
    %v204 = vsel %vm200, 1, 0
    %v205 = vsel %vm201, 1, 0
    %v206 = vcvt.s32.f32 %v202
    %v207 = vcvt.s32.f32 %v203
    %v208 = vcvt.s32.f32 %v204
    %v209 = vcvt.s32.f32 %v205
    %v210 = vadd.f32 %v191, %v206
    %v211 = vadd.f32 %v192, %v207
    %v212 = vadd.f32 %v193, %v208
    %v213 = vadd.f32 %v194, %v209
    %v214 = vld [vmem:[#allocation2] sm:$0xff]
    %v215 = vld [vmem:[#allocation7] sm:$0xf]
    %v217 = vperm.slane %v215, 0
    %v218 = vperm.slane %v215, 1
    %v219 = vperm.slane %v215, 2
    %v220 = vperm.slane %v215, 3
    %v225 = vmul.f32 %v210, %v217
    %v226 = vmul.f32 %v211, %v218
    %v227 = vmul.f32 %v212, %v219
    %v228 = vmul.f32 %v213, %v220
    %v229 = vadd.f32 %v225, %v226
    %v230 = vadd.f32 %v229, %v227
    %v231 = vadd.f32 %v230, %v228
    %232 = vadd.xlane.f32.xlu0 %v231
    %v233 = vpop.xlane.xlu0 %232
    %v234 = vadd.f32 %v214, %v233
    %vm235 = vcmask 7168
    %236 = vst.msk [vmem:[#allocation2] sm:$0xff] %vm235, %v234
    // Predicated region
    $region26: #{tpu_custom_call.1} parent=1 // pred_check
      %p237 = pneg %p44
    $region27: #{tpu_custom_call.1} parent=1 // pred_check_branch
      %239 = sbr.rel (%p237) target = $region29
    $region28: #{tpu_custom_call.1} parent=1 // pred_region
      %v240 = vld [vmem:[#allocation2] sm:$0xff]
      %v241 = vmul.f32 %v240, 0.125
      %s242 = sld [smem:[#allocation3]]
      %v243 = vstv %s242
      %v244 = vadd.f32 %v241, %v243
      %246 = vset.pattern.permute.xlu0 0
      %247 = vperm.xlu0 %246, %v244
      %v248 = vpop.permute.xlu0 %247
      %250 = vst [vmem:[#allocation9] sm:$0xff] %v248
    $region29: #{tpu_custom_call.1} parent=1 // pred_fallthru
      _
    // Predicated region
    $region30: #{tpu_custom_call.1} parent=1 // pred_check
      _
    $region31: #{tpu_custom_call.1} parent=1 // pred_check_branch
      %252 = sbr.rel (0) target = $region33
    $region32: #{tpu_custom_call.1} parent=1 // pred_region
      %254 = vsyncadd [#allocation6], 0
      %s256 = sshll.u32 [#allocation9], 4
      %s257 = int_to_ptr.vmem [resolvable:$true] %s256
      %s258 = sshll.u32 %s3, 4
      %s259 = int_to_ptr.hbm [resolvable:$true] %s258
      %261 = dma.vmem_to_hbm [thread:$0]  %s257, 128, %s259, [#allocation6]
    $region33: #{tpu_custom_call.1} parent=1 // pred_fallthru
      _
    // Predicated region
    $region34: #{tpu_custom_call.1} parent=1 // pred_check
      _
    $region35: #{tpu_custom_call.1} parent=1 // pred_check_branch
      %263 = sbr.rel (0) target = $region37
    $region36: #{tpu_custom_call.1} parent=1 // pred_region
      %265 = dma.done [#allocation6], 128
    $region37: #{tpu_custom_call.1} parent=1 // pred_fallthru
      _
    %266 = vsyncpa [#allocation5], 1
    %267 = vsyncpa [#allocation8], 1
    %268 = vsyncpa [#allocation6], 1

</llo_original>
